<compile_context>
chip_gen: v6e
topology: v6e:2x2x1
jax: 0.10.0
libtpu: 0.0.40
codegen_flags: <defaults>
</compile_context>

<pallas_src>
import jax
import jax.numpy as jnp
from jax.experimental import pallas as pl
from jax.experimental.pallas import tpu as pltpu


def _round_up(x, m):
    return (x + m - 1) // m * m


def _sublane(dtype):
    # 8 sublanes of 32-bit; sub-32-bit dtypes pack along sublanes.
    bits = jnp.dtype(dtype).itemsize * 8
    return max(8, 256 // bits)


def _pad_hidden(h):
    hp = _round_up(h, 128)
    # Pad awkward 128-multiples up to a 256 multiple -> full 256-wide MXU tiles.
    if hp > 256:
        hp = _round_up(hp, 256)
    return hp


def _pick_block(hp, prefer=(512, 256, 128)):
    for c in prefer:
        if c <= hp and hp % c == 0:
            return c
    return hp


# ----------------------------- kernels ------------------------------------ #

def _mlp_kernel_fullk(x_ref, wt_ref, b_ref, o_ref):
    # Full reduction in one step: no scratch, no K grid axis.
    y = jnp.dot(x_ref[...], wt_ref[...], preferred_element_type=jnp.float32)
    y = y + b_ref[...].astype(jnp.float32)
    o_ref[...] = jnp.tanh(y).astype(o_ref.dtype)


def _mlp_kernel_acc_out(x_ref, wt_ref, b_ref, o_ref):
    # f32 output: accumulate directly into the resident output tile.
    k = pl.program_id(2)

    @pl.when(k == 0)
    def _():
        o_ref[...] = jnp.zeros_like(o_ref)

    o_ref[...] += jnp.dot(x_ref[...], wt_ref[...],
                          preferred_element_type=jnp.float32)

    @pl.when(k == pl.num_programs(2) - 1)
    def _():
        o_ref[...] = jnp.tanh(o_ref[...] + b_ref[...].astype(jnp.float32))


def _mlp_kernel_acc_scratch(x_ref, wt_ref, b_ref, o_ref, acc_ref):
    # Non-f32 output: f32 VMEM accumulator, downcast only in the epilogue.
    k = pl.program_id(2)

    @pl.when(k == 0)
    def _():
        acc_ref[...] = jnp.zeros_like(acc_ref)

    acc_ref[...] += jnp.dot(x_ref[...], wt_ref[...],
                            preferred_element_type=jnp.float32)

    @pl.when(k == pl.num_programs(2) - 1)
    def _():
        y = acc_ref[...] + b_ref[...].astype(jnp.float32)
        o_ref[...] = jnp.tanh(y).astype(o_ref.dtype)


# ----------------------------- wrappers ------------------------------------ #

def prepare_mlp_params(weight, bias, *, param_dtype=None):
    """One-time host-side param prep (hoisted out of the per-call path).

    weight: [out, in] (torch nn.Linear convention); bias: [out].
    Returns (wt_p [Hp, Hp] in [in, out] layout zero-padded, bias_p [1, Hp]).
    Optionally cast params (e.g. to bf16) for the fast MXU path.
    """
    h_out, h_in = weight.shape
    assert h_out == h_in, "MLPLayer uses a square hidden->hidden Linear"
    h = h_in
    hp = _pad_hidden(h)
    wt = weight.T
    if param_dtype is not None:
        wt = wt.astype(param_dtype)
    if hp != h:
        wt = jnp.pad(wt, ((0, hp - h), (0, hp - h)))
        bias = jnp.pad(bias, ((0, hp - h),))
    return wt, bias.reshape(1, hp)


def mlp_layer_apply(features, wt_p, bias_p, *, block_rows=None, block_n=None,
                    block_k=None, vmem_budget_bytes=28 << 20):
    """tanh(features @ W.T + b) with pre-prepared (transposed + padded) params.

    features: [B, H]; wt_p: [Hp, Hp] ([in, out], padded); bias_p: [1, Hp].
    """
    B, H = features.shape
    Hp = wt_p.shape[0]
    assert wt_p.shape == (Hp, Hp) and bias_p.shape == (1, Hp)
    assert _pad_hidden(H) == Hp, "params were prepared for a different hidden_dim"

    dtype = features.dtype
    out_dtype = dtype
    in_bytes = jnp.dtype(dtype).itemsize
    w_bytes = jnp.dtype(wt_p.dtype).itemsize
    out_bytes = jnp.dtype(out_dtype).itemsize
    sub = _sublane(dtype)

    # --- M (batch) tiling: aim near 512 rows (MXU-bound on v6e/v7x) but pick
    # block_rows so the last tile isn't mostly padding. ---
    Bp0 = _round_up(B, sub)
    if block_rows is None:
        target = 512
        n_m = pl.cdiv(Bp0, target)
        block_rows = _round_up(pl.cdiv(Bp0, n_m), sub)
    block_rows = max(sub, _round_up(block_rows, sub))

    # --- N / K tiling. ---
    n_m = pl.cdiv(Bp0, block_rows)
    if block_n is None:
        if n_m == 1:
            # Single M tile: weights stream once; wide N reads x fewer times and
            # keeps stores lane-dense.  Split in two when possible so a 1x1
            # parallel grid doesn't idle v7x's second TensorCore.
            block_n = Hp // 2 if (Hp % 256 == 0) else Hp
        else:
            block_n = _pick_block(Hp)
    if block_k is None:
        # Prefer full-K: no scratch accumulator, no per-step acc RMW, no K axis.
        block_k = Hp
    assert Hp % block_n == 0 and Hp % block_k == 0

    # --- VMEM budget (double-buffered tiles + scratch); shrink K, then N,
    # then M until it fits (keeps headroom on v7x's 64 MiB per-TC VMEM). ---
    def _vmem_bytes(bm, bn, bk):
        tiles = 2 * (bm * bk * in_bytes + bk * bn * w_bytes + bn * w_bytes
                     + bm * bn * out_bytes)
        needs_scratch = (bk != Hp) and (out_dtype != jnp.float32)
        return tiles + (bm * bn * 4 if needs_scratch else 0)

    def _shrink(v):
        for c in (2048, 1024, 512, 256, 128):
            if c < v and Hp % c == 0:
                return c
        return v

    while _vmem_bytes(block_rows, block_n, block_k) > vmem_budget_bytes:
        nk = _shrink(block_k)
        if nk < block_k:
            block_k = nk
            continue
        nn = _shrink(block_n)
        if nn < block_n:
            block_n = nn
            continue
        if block_rows > sub:
            block_rows = max(sub, _round_up(block_rows // 2, sub))
            continue
        break

    n_m = pl.cdiv(Bp0, block_rows)
    Bp = n_m * block_rows
    n_n = Hp // block_n
    n_k = Hp // block_k

    # --- Per-call padding of the activation only (weights are pre-padded). ---
    x_p = features
    if (Bp, Hp) != (B, H):
        x_p = jnp.pad(features, ((0, Bp - B), (0, Hp - H)))

    vmem_need = _vmem_bytes(block_rows, block_n, block_k)
    vmem_limit = int(min(48 << 20, max(32 << 20, vmem_need + (4 << 20))))

    def _cparams(sem):
        return pltpu.CompilerParams(dimension_semantics=sem,
                                    vmem_limit_bytes=vmem_limit)

    cost = pl.CostEstimate(
        flops=2 * Bp * Hp * Hp,
        transcendentals=Bp * Hp,
        bytes_accessed=(Bp * Hp * in_bytes          # x read
                        + n_m * Hp * Hp * w_bytes   # weight re-read per M tile
                        + Hp * w_bytes              # bias
                        + Bp * Hp * out_bytes),     # output write
    )

    if n_k == 1:
        out_p = pl.pallas_call(
            _mlp_kernel_fullk,
            out_shape=jax.ShapeDtypeStruct((Bp, Hp), out_dtype),
            grid_spec=pltpu.PrefetchScalarGridSpec(
                num_scalar_prefetch=0,
                grid=(n_m, n_n),
                in_specs=[
                    pl.BlockSpec((block_rows, Hp), lambda i, j: (i, 0)),   # x
                    pl.BlockSpec((Hp, block_n), lambda i, j: (0, j)),      # Wt
                    pl.BlockSpec((1, block_n), lambda i, j: (0, j)),       # bias
                ],
                out_specs=pl.BlockSpec((block_rows, block_n),
                                       lambda i, j: (i, j)),
            ),
            compiler_params=_cparams(("parallel", "parallel")),
            cost_estimate=cost,
        )(x_p, wt_p, bias_p)
    else:
        in_specs = [
            pl.BlockSpec((block_rows, block_k), lambda i, j, k: (i, k)),   # x
            pl.BlockSpec((block_k, block_n), lambda i, j, k: (k, j)),      # Wt
            pl.BlockSpec((1, block_n), lambda i, j, k: (0, j)),            # bias
        ]
        out_spec = pl.BlockSpec((block_rows, block_n), lambda i, j, k: (i, j))
        if out_dtype == jnp.float32:
            kernel, scratch = _mlp_kernel_acc_out, []
        else:
            kernel = _mlp_kernel_acc_scratch
            scratch = [pltpu.VMEM((block_rows, block_n), jnp.float32)]
        out_p = pl.pallas_call(
            kernel,
            out_shape=jax.ShapeDtypeStruct((Bp, Hp), out_dtype),
            grid_spec=pltpu.PrefetchScalarGridSpec(
                num_scalar_prefetch=0,
                grid=(n_m, n_n, n_k),
                in_specs=in_specs,
                out_specs=out_spec,
                scratch_shapes=scratch,
            ),
            compiler_params=_cparams(("parallel", "parallel", "arbitrary")),
            cost_estimate=cost,
        )(x_p, wt_p, bias_p)

    if (Bp, Hp) != (B, H):
        out_p = out_p[:B, :H]
    return out_p


def mlp_layer(features, weight, bias, **tile_kwargs):
    """Convenience wrapper (torch-convention params). Prefer calling
    prepare_mlp_params once and reusing mlp_layer_apply in hot loops."""
    wt_p, b_p = prepare_mlp_params(weight, bias)
    return mlp_layer_apply(features, wt_p, b_p, **tile_kwargs)


if __name__ == "__main__":
    # Config implied by the module: hidden_dim. Small demo shapes.
    batch = 8
    hidden_dim = 32

    key = jax.random.PRNGKey(0)
    k_x, k_w, k_b = jax.random.split(key, 3)

    features = jax.random.normal(k_x, (batch, hidden_dim), dtype=jnp.float32)
    # nn.Linear(hidden_dim, hidden_dim): W is [out, in], b is [out].
    weight = jax.random.normal(k_w, (hidden_dim, hidden_dim), dtype=jnp.float32) * 0.05
    bias = jax.random.normal(k_b, (hidden_dim,), dtype=jnp.float32) * 0.05

    # One-time param prep (hoisted out of the per-call path), jitted apply.
    wt_p, b_p = prepare_mlp_params(weight, bias)
    apply_fn = jax.jit(mlp_layer_apply)
    out = apply_fn(features, wt_p, b_p)
    out = jax.block_until_ready(out)

    # Reference check in plain JAX (same math as torch: tanh(x @ W.T + b)).
    ref = jnp.tanh(features @ weight.T + bias)
    assert out.shape == (batch, hidden_dim)
    assert jnp.allclose(out, ref, atol=1e-5, rtol=1e-5), "mismatch vs reference"

    print("KERNEL_OK")
</pallas_src>

<mosaic_0001>
module attributes {stable_mosaic.version = 11 : i64} {
  func.func @_mlp_kernel_fullk(%arg0: i32, %arg1: i32, %arg2: memref<8x128xf32, #tpu.memory_space<vmem>>, %arg3: memref<128x128xf32, #tpu.memory_space<vmem>>, %arg4: memref<1x128xf32, #tpu.memory_space<vmem>>, %arg5: memref<8x128xf32, #tpu.memory_space<vmem>>) attributes {dimension_semantics = [#tpu.dimension_semantics<parallel>, #tpu.dimension_semantics<parallel>], iteration_bounds = array<i64: 1, 1>, scalar_prefetch = 0 : i64, scratch_operands = 0 : i64, tpu.core_type = #tpu.core_type<tc>, window_params = [{transform_indices = @transform_0, window_bounds = array<i64: 8, 128>}, {transform_indices = @transform_1, window_bounds = array<i64: 128, 128>}, {transform_indices = @transform_2, window_bounds = array<i64: 1, 128>}, {transform_indices = @transform_3, window_bounds = array<i64: 8, 128>}]} {
    %c0 = arith.constant 0 : index
    %c0_0 = arith.constant 0 : index
    %0 = vector.load %arg2[%c0, %c0_0] : memref<8x128xf32, #tpu.memory_space<vmem>>, vector<8x128xf32>
    %c0_1 = arith.constant 0 : index
    %c0_2 = arith.constant 0 : index
    %1 = vector.load %arg3[%c0_1, %c0_2] : memref<128x128xf32, #tpu.memory_space<vmem>>, vector<128x128xf32>
    %cst = arith.constant dense<0.000000e+00> : vector<8x128xf32>
    %2 = tpu.matmul %0, %1, %cst {dimension_numbers = #tpu.dot_dimension_numbers<[1], [0], [0], [1], [0, 0, 1, 1], [], []>} : vector<8x128xf32>, vector<128x128xf32>, vector<8x128xf32> -> vector<8x128xf32>
    %c0_3 = arith.constant 0 : index
    %c0_4 = arith.constant 0 : index
    %3 = vector.load %arg4[%c0_3, %c0_4] : memref<1x128xf32, #tpu.memory_space<vmem>>, vector<1x128xf32>
    %4 = vector.broadcast %3 : vector<1x128xf32> to vector<8x128xf32>
    %5 = arith.addf %2, %4 : vector<8x128xf32>
    %6 = math.tanh %5 : vector<8x128xf32>
    %c0_5 = arith.constant 0 : index
    %c0_6 = arith.constant 0 : index
    %7 = vector.load %arg5[%c0_5, %c0_6] : memref<8x128xf32, #tpu.memory_space<vmem>>, vector<8x128xf32>
    tpu.vector_store %arg5[%c0_5, %c0_6], %6 {strides = array<i32>} : memref<8x128xf32, #tpu.memory_space<vmem>>, vector<8x128xf32>,
    return
  }
  func.func @transform_0(%arg0: i32, %arg1: i32) -> (i32, i32) {
    %c0_i32 = arith.constant 0 : i32
    %c0_i32_0 = arith.constant 0 : i32
    return %arg0, %c0_i32 : i32, i32
  }
  func.func @transform_1(%arg0: i32, %arg1: i32) -> (i32, i32) {
    %c0_i32 = arith.constant 0 : i32
    %c0_i32_0 = arith.constant 0 : i32
    return %c0_i32, %arg1 : i32, i32
  }
  func.func @transform_2(%arg0: i32, %arg1: i32) -> (i32, i32) {
    %c0_i32 = arith.constant 0 : i32
    %c0_i32_0 = arith.constant 0 : i32
    return %c0_i32, %arg1 : i32, i32
  }
  func.func @transform_3(%arg0: i32, %arg1: i32) -> (i32, i32) {
    %c0_i32 = arith.constant 0 : i32
    return %arg0, %arg1 : i32, i32
  }
}

</mosaic_0001>

<llo_original>
// kernel: mlp_layer_apply.1
$region0: #{mlp_layer_apply.1}
  #allocation0 [shape = 'u32[]', space=smem, size = 0x4, offset = 0x4, fixed_abs, tag = 'smem constant byte address 0x4 - core index']
  #allocation1 [shape = 'u32[144,128]{1,0:T(1,128)}', space=vmem, size = 0x12000, scoped, tag = 'internal scratch']
  %s0 = inlined_call_operand.vmem [shape: f32[8,128], index: 0, kind: input, shape index: {}]
  %s1 = inlined_call_operand.hbm [shape: f32[128,128], index: 1, kind: input, shape index: {}]
  %s2 = inlined_call_operand.vmem [shape: f32[1,128], index: 2, kind: input, shape index: {}]
  %s3 = inlined_call_operand.hbm [shape: f32[8,128], index: 3, kind: output, shape index: {}]
  %s4 = sld [smem:[#allocation0]]
  $region26: #{mlp_layer_apply.1} parent=0
    _
  %s6 = ssub.s32 1, %s4
  %s7 = scalar_select 0, %s6, %s4
  $region1: #{mlp_layer_apply.1} parent=0
    #allocation2 [shape = 'u8[65536]{0}', space=vmem, size = 0x10000, scoped, tag = 'input window, operand 1, single buffered']
    #allocation3 [shape = 's32[1]{0}', space=sflag, size = 0x4, scoped, tag = 'scoped memory for mlp_layer_apply.1']
    #allocation4 [shape = 's32[1]{0}', space=sflag, size = 0x4, scoped, tag = 'scoped memory for mlp_layer_apply.1']
    #allocation5 [shape = 'u8[4096]{0}', space=vmem, size = 0x1000, scoped, tag = 'output window, operand 0, single buffered']
    %8 = vsyncpa [#allocation3], 0
    %9 = vsyncpa [#allocation4], 0
    // Predicated region
    $region2: #{mlp_layer_apply.1} parent=1 // pred_check
      _
    $region3: #{mlp_layer_apply.1} parent=1 // pred_check_branch
      %11 = sbr.rel (0) target = $region5
    $region4: #{mlp_layer_apply.1} parent=1 // pred_region
      _
    $region5: #{mlp_layer_apply.1} parent=1 // pred_fallthru
      _
    // Predicated region
    $region6: #{mlp_layer_apply.1} parent=1 // pred_check
      _
    $region7: #{mlp_layer_apply.1} parent=1 // pred_check_branch
      %13 = sbr.rel (0) target = $region9
    $region8: #{mlp_layer_apply.1} parent=1 // pred_region
      %s15 = ssub.s32 2048, 2048
      %16 = vsyncadd [#allocation3], %s15
      %s17 = sshll.u32 [#allocation2], 4
      %s18 = int_to_ptr.vmem [resolvable:$true] %s17
      %23 = dma.hbm_to_vmem [thread:$0]  %s1, 2048, %s18, [#allocation3], 128, 128, 8
    $region9: #{mlp_layer_apply.1} parent=1 // pred_fallthru
      _
    // Predicated region
    $region10: #{mlp_layer_apply.1} parent=1 // pred_check
      _
    $region11: #{mlp_layer_apply.1} parent=1 // pred_check_branch
      %25 = sbr.rel (0) target = $region13
    $region12: #{mlp_layer_apply.1} parent=1 // pred_region
      _
    $region13: #{mlp_layer_apply.1} parent=1 // pred_fallthru
      _
    // Predicated region
    $region14: #{mlp_layer_apply.1} parent=1 // pred_check
      _
    $region15: #{mlp_layer_apply.1} parent=1 // pred_check_branch
      %27 = sbr.rel (0) target = $region17
    $region16: #{mlp_layer_apply.1} parent=1 // pred_region
      %28 = dma.done [#allocation3], 2048
    $region17: #{mlp_layer_apply.1} parent=1 // pred_fallthru
      _
    %v29 = vld [vmem:[%s0] sm:$0xff]
    %v30 = vld [vmem:[#allocation2] sm:$0xff]
    %v31 = vld [vmem:[#allocation2 + $0x8] sm:$0xff]
    %v32 = vld [vmem:[#allocation2 + $0x10] sm:$0xff]
    %v33 = vld [vmem:[#allocation2 + $0x18] sm:$0xff]
    %v34 = vld [vmem:[#allocation2 + $0x20] sm:$0xff]
    %v35 = vld [vmem:[#allocation2 + $0x28] sm:$0xff]
    %v36 = vld [vmem:[#allocation2 + $0x30] sm:$0xff]
    %v37 = vld [vmem:[#allocation2 + $0x38] sm:$0xff]
    %v38 = vld [vmem:[#allocation2 + $0x40] sm:$0xff]
    %v39 = vld [vmem:[#allocation2 + $0x48] sm:$0xff]
    %v40 = vld [vmem:[#allocation2 + $0x50] sm:$0xff]
    %v41 = vld [vmem:[#allocation2 + $0x58] sm:$0xff]
    %v42 = vld [vmem:[#allocation2 + $0x60] sm:$0xff]
    %v43 = vld [vmem:[#allocation2 + $0x68] sm:$0xff]
    %v44 = vld [vmem:[#allocation2 + $0x70] sm:$0xff]
    %v45 = vld [vmem:[#allocation2 + $0x78] sm:$0xff]
    %v46 = vld [vmem:[%s2] sm:$0x1]
    %v48 = vlaneseq
    %v49 = vshrl.u32 %v48, 7
    %v50 = vsub.s32 0, %v49
    %v51 = vrot.slane %v46, %v50
    %53 = vmatprep.subr.mxu0 0.0
    %54 = vmatpush1.msra.mxu0 %v45
    %55 = vmatprep.subr.mxu0 0.0
    %56 = vmatpush1.msra.mxu0 %v44
    %57 = vmatprep.subr.mxu0 0.0
    %58 = vmatpush1.msra.mxu0 %v43
    %59 = vmatprep.subr.mxu0 0.0
    %60 = vmatpush1.msra.mxu0 %v42
    %61 = vmatprep.subr.mxu0 0.0
    %62 = vmatpush1.msra.mxu0 %v41
    %63 = vmatprep.subr.mxu0 0.0
    %64 = vmatpush1.msra.mxu0 %v40
    %65 = vmatprep.subr.mxu0 0.0
    %66 = vmatpush1.msra.mxu0 %v39
    %67 = vmatprep.subr.mxu0 0.0
    %68 = vmatpush1.msra.mxu0 %v38
    %69 = vmatprep.subr.mxu0 0.0
    %70 = vmatpush1.msra.mxu0 %v37
    %71 = vmatprep.subr.mxu0 0.0
    %72 = vmatpush1.msra.mxu0 %v36
    %73 = vmatprep.subr.mxu0 0.0
    %74 = vmatpush1.msra.mxu0 %v35
    %75 = vmatprep.subr.mxu0 0.0
    %76 = vmatpush1.msra.mxu0 %v34
    %77 = vmatprep.subr.mxu0 0.0
    %78 = vmatpush1.msra.mxu0 %v33
    %79 = vmatprep.subr.mxu0 0.0
    %80 = vmatpush1.msra.mxu0 %v32
    %81 = vmatprep.subr.mxu0 0.0
    %82 = vmatpush1.msra.mxu0 %v31
    %83 = vmatprep.subr.mxu0 0.0
    %84 = vmatpush1.msra.mxu0 %v30
    %85 = vmatprep.subr.mxu0 0.0
    %86 = vmatpush2.msra.mxu0 0.0
    %87 = vmatprep.subr.mxu0 0.0
    %88 = vmatpush2.msra.mxu0 0.0
    %89 = vmatprep.subr.mxu0 0.0
    %90 = vmatpush2.msra.mxu0 0.0
    %91 = vmatprep.subr.mxu0 0.0
    %92 = vmatpush2.msra.mxu0 0.0
    %93 = vmatprep.subr.mxu0 0.0
    %94 = vmatpush2.msra.mxu0 0.0
    %95 = vmatprep.subr.mxu0 0.0
    %96 = vmatpush2.msra.mxu0 0.0
    %97 = vmatprep.subr.mxu0 0.0
    %98 = vmatpush2.msra.mxu0 0.0
    %99 = vmatprep.subr.mxu0 0.0
    %100 = vmatpush2.msra.mxu0 0.0
    %101 = vmatprep.subr.mxu0 0.0
    %102 = vmatpush2.msra.mxu0 0.0
    %103 = vmatprep.subr.mxu0 0.0
    %104 = vmatpush2.msra.mxu0 0.0
    %105 = vmatprep.subr.mxu0 0.0
    %106 = vmatpush2.msra.mxu0 0.0
    %107 = vmatprep.subr.mxu0 0.0
    %108 = vmatpush2.msra.mxu0 0.0
    %109 = vmatprep.subr.mxu0 0.0
    %110 = vmatpush2.msra.mxu0 0.0
    %111 = vmatprep.subr.mxu0 0.0
    %112 = vmatpush2.msra.mxu0 0.0
    %113 = vmatprep.subr.mxu0 0.0
    %114 = vmatpush2.msra.mxu0 0.0
    %115 = vmatprep.subr.mxu0 0.0
    %116 = vmatpush2.msra.mxu0 0.0
    %117 = vmatprep.mubr.f32.mxu0 0.0
    %118 = vmatmul.mubr.f32.gmra.mxu0 %v29
    %v119 = vpop.f32.mrf.mxu0
    %v120 = vadd.f32 %v51, %v119
    %v121 = vpop.f32.mrf.mxu0
    %122 = vdwg.mxu0
    %v123 = vtanh.pop %v120
    %124 = vst [vmem:[#allocation5] sm:$0xff] %v123
    // Predicated region
    $region18: #{mlp_layer_apply.1} parent=1 // pred_check
      _
    $region19: #{mlp_layer_apply.1} parent=1 // pred_check_branch
      %126 = sbr.rel (0) target = $region21
    $region20: #{mlp_layer_apply.1} parent=1 // pred_region
      %s128 = ssub.s32 128, 128
      %129 = vsyncadd [#allocation4], %s128
      %s131 = sshll.u32 [#allocation5], 4
      %s132 = int_to_ptr.vmem [resolvable:$true] %s131
      %134 = dma.vmem_to_hbm [thread:$0]  %s132, 128, %s3, [#allocation4]
    $region21: #{mlp_layer_apply.1} parent=1 // pred_fallthru
      _
    // Predicated region
    $region22: #{mlp_layer_apply.1} parent=1 // pred_check
      _
    $region23: #{mlp_layer_apply.1} parent=1 // pred_check_branch
      %136 = sbr.rel (0) target = $region25
    $region24: #{mlp_layer_apply.1} parent=1 // pred_region
      %137 = dma.done [#allocation4], 128
    $region25: #{mlp_layer_apply.1} parent=1 // pred_fallthru
      _
    %138 = vsyncpa [#allocation3], 1
    %139 = vsyncpa [#allocation4], 1

</llo_original>
